<compile_context>
chip_gen: v7x
topology: tpu7x:2x2x1
jax: 0.10.0
libtpu: 0.0.40
codegen_flags: <defaults>
</compile_context>

<pallas_src>
import jax
import jax.numpy as jnp
from jax.experimental import pallas as pl
from jax.experimental.pallas import tpu as pltpu

_LANE = 128
_SUBLANE = 8
_W = 1024                  # lane width of the flattened slab (multiple of 128)
_MAX_BLOCK_ROWS = 512      # 512 x 1024 x 4B = 2 MiB per f32 input tile
_VMEM_BUDGET = 24 << 20    # budget for double-buffered input tiles (v7x-safe)


def _round_up(x, m):
    return ((x + m - 1) // m) * m


def _loss_kernel(y_ref, yp_ref, out_ref):
    """Unmasked: out_ref (8, W) accumulates sum over tiles of (Y_pred - Y)^2."""
    k = pl.program_id(1)

    @pl.when(k == 0)
    def _():
        out_ref[...] = jnp.zeros_like(out_ref)

    tr, w = y_ref.shape
    acc = jnp.zeros((_SUBLANE, w), jnp.float32)
    # Chunk-wise compute: only one (8, W) diff is live at a time -> no big
    # (TR, W) f32 intermediate, no vreg spills even at TR = 512.
    for r in range(0, tr, _SUBLANE):
        d = (yp_ref[r:r + _SUBLANE, :].astype(jnp.float32)
             - y_ref[r:r + _SUBLANE, :].astype(jnp.float32))
        acc = acc + d * d
    out_ref[...] += acc


def _loss_kernel_masked(y_ref, yp_ref, l_ref, out_ref):
    """Masked: accumulates (L*Y_pred - L*Y)^2 (exactly as the reference)."""
    k = pl.program_id(1)

    @pl.when(k == 0)
    def _():
        out_ref[...] = jnp.zeros_like(out_ref)

    tr, w = y_ref.shape
    acc = jnp.zeros((_SUBLANE, w), jnp.float32)
    for r in range(0, tr, _SUBLANE):
        l = l_ref[r:r + _SUBLANE, :].astype(jnp.float32)
        d = (l * yp_ref[r:r + _SUBLANE, :].astype(jnp.float32)
             - l * y_ref[r:r + _SUBLANE, :].astype(jnp.float32))
        acc = acc + d * d
    out_ref[...] += acc


def _num_tensorcores():
    """2 on v7x (2 TCs/chip); 1 on v5e/v6e or when the runtime doesn't say."""
    try:
        return max(1, int(getattr(jax.devices()[0], "num_cores", 1)))
    except Exception:
        return 1


def classification_loss_l2(Y, Y_pred, L=None, *, max_block_rows=_MAX_BLOCK_ROWS):
    """Pallas implementation of ClassificationLossL2.forward.

    Y, Y_pred (and optional L): (c, n) arrays (any n).  Returns a scalar
    float32: mean of squared (optionally masked) residuals over all c*n entries.
    """
    c, n = Y.shape
    assert Y_pred.shape == (c, n)
    if L is not None:
        assert L.shape == (c, n)
    total = c * n

    args = (Y, Y_pred) if L is None else (Y, Y_pred, L)
    n_inputs = len(args)
    itemsize = max(jnp.dtype(a.dtype).itemsize for a in args)

    # ---- tiling over the flattened, lane-dense (rows, _W) slab --------------
    rows = _round_up(-(-total // _W), _SUBLANE)           # cdiv then pad to x8
    per_tile_budget = _VMEM_BUDGET // (n_inputs * 2)      # double-buffered
    tr = max(_SUBLANE, min(max_block_rows, per_tile_budget // (_W * itemsize)))
    tr = (tr // _SUBLANE) * _SUBLANE
    tr = min(tr, rows)

    # Shard across TensorCores only when there are >= 2 blocks of work (v7x).
    p = 2 if (_num_tensorcores() >= 2 and rows > tr) else 1
    rows_pad = _round_up(rows, p * tr)
    steps = rows_pad // (p * tr)
    padded_total = rows_pad * _W

    def prep(x):
        flat = x.reshape(-1)
        if padded_total != total:
            flat = jnp.pad(flat, (0, padded_total - total))   # zeros: add 0 to sum
        return flat.reshape(rows_pad, _W)

    tiled_args = tuple(prep(a) for a in args)

    in_spec = pl.BlockSpec((tr, _W), lambda pi, ki: (pi * steps + ki, 0))
    out_spec = pl.BlockSpec((None, _SUBLANE, _W), lambda pi, ki: (pi, 0, 0))

    # Explicit VMEM limit: double-buffered input tiles + output block + headroom.
    input_bytes = n_inputs * 2 * tr * _W * itemsize
    out_bytes = 2 * _SUBLANE * _W * 4
    vmem_limit = max(input_bytes + out_bytes + (2 << 20), 4 << 20)

    kernel = _loss_kernel if L is None else _loss_kernel_masked

    out = pl.pallas_call(
        kernel,
        out_shape=jax.ShapeDtypeStruct((p, _SUBLANE, _W), jnp.float32),
        grid_spec=pltpu.PrefetchScalarGridSpec(
            num_scalar_prefetch=0,
            grid=(p, steps),
            in_specs=[in_spec] * n_inputs,
            out_specs=out_spec,
        ),
        compiler_params=pltpu.CompilerParams(
            dimension_semantics=("parallel", "arbitrary"),
            vmem_limit_bytes=int(vmem_limit),
        ),
    )(*tiled_args)

    # Single cross-lane/sublane reduce + mean normalization, once, outside.
    return jnp.sum(out) / jnp.float32(total)


if __name__ == "__main__":
    key = jax.random.PRNGKey(0)
    k1, k2, k3 = jax.random.split(key, 3)

    c, n = 8, 256  # classes x samples

    labels = jax.random.randint(k1, (n,), 0, c)
    Y = jax.nn.one_hot(labels, c, dtype=jnp.float32).T               # (c, n)
    Y_pred = jax.random.uniform(k2, (c, n), dtype=jnp.float32)       # (c, n)
    has_label = (jax.random.uniform(k3, (n,)) < 0.5).astype(jnp.float32)
    L = jnp.broadcast_to(has_label[None, :], (c, n))                 # (c, n)

    # Full supervision (L is None) — specialized unmasked kernel.
    loss_full = classification_loss_l2(Y, Y_pred)
    # Semi-supervision (with mask L).
    loss_semi = classification_loss_l2(Y, Y_pred, L)
    jax.block_until_ready((loss_full, loss_semi))

    ref_full = jnp.mean((Y_pred - Y) ** 2)
    ref_semi = jnp.mean((L * Y_pred - L * Y) ** 2)
    assert jnp.allclose(loss_full, ref_full, rtol=1e-5, atol=1e-6), (loss_full, ref_full)
    assert jnp.allclose(loss_semi, ref_semi, rtol=1e-5, atol=1e-6), (loss_semi, ref_semi)

    # Ragged case (n not a multiple of 128) — exercises padding path.
    c2, n2 = 5, 100
    Y2 = jax.random.normal(k1, (c2, n2), dtype=jnp.float32)
    Yp2 = jax.random.normal(k2, (c2, n2), dtype=jnp.float32)
    loss_ragged = classification_loss_l2(Y2, Yp2)
    jax.block_until_ready(loss_ragged)
    assert jnp.allclose(loss_ragged, jnp.mean((Yp2 - Y2) ** 2), rtol=1e-5, atol=1e-6)

    # Multi-step reduction test (small block rows forces several grid steps).
    c3, n3 = 32, 2048
    Y3 = jax.random.normal(k2, (c3, n3), dtype=jnp.float32)
    Yp3 = jax.random.normal(k3, (c3, n3), dtype=jnp.float32)
    L3 = (jax.random.uniform(k1, (c3, n3)) < 0.5).astype(jnp.float32)
    loss_multi = classification_loss_l2(Y3, Yp3, L3, max_block_rows=8)
    jax.block_until_ready(loss_multi)
    assert jnp.allclose(loss_multi, jnp.mean((L3 * Yp3 - L3 * Y3) ** 2),
                        rtol=1e-5, atol=1e-6)

    print("KERNEL_OK")
</pallas_src>

<mosaic_0001>
module attributes {stable_mosaic.version = 11 : i64} {
  func.func @_loss_kernel(%arg0: i32, %arg1: i32, %arg2: memref<8x1024xf32, #tpu.memory_space<vmem>>, %arg3: memref<8x1024xf32, #tpu.memory_space<vmem>>, %arg4: memref<1x8x1024xf32, #tpu.memory_space<vmem>>) attributes {dimension_semantics = [#tpu.dimension_semantics<parallel>, #tpu.dimension_semantics<arbitrary>], iteration_bounds = array<i64: 1, 1>, scalar_prefetch = 0 : i64, scratch_operands = 0 : i64, tpu.core_type = #tpu.core_type<tc>, window_params = [{transform_indices = @transform_0, window_bounds = array<i64: 8, 1024>}, {transform_indices = @transform_1, window_bounds = array<i64: 8, 1024>}, {transform_indices = @transform_2, window_bounds = array<i64: 1, 8, 1024>}]} {
    %c0_i32 = arith.constant 0 : i32
    %0 = arith.cmpi eq, %arg1, %c0_i32 : i32
    %1 = arith.extui %0 : i1 to i32
    %c0_i32_0 = arith.constant 0 : i32
    %2 = arith.cmpi ne, %1, %c0_i32_0 : i32
    scf.if %2 {
      %cst_10 = arith.constant 0.000000e+00 : f32
      %15 = vector.broadcast %cst_10 : f32 to vector<8x1024xf32>
      %c0_11 = arith.constant 0 : index
      %c0_12 = arith.constant 0 : index
      %c0_13 = arith.constant 0 : index
      %16 = vector.load %arg4[%c0_11, %c0_12, %c0_13] : memref<1x8x1024xf32, #tpu.memory_space<vmem>>, vector<1x8x1024xf32>
      %17 = vector.shape_cast %16 : vector<1x8x1024xf32> to vector<8x1024xf32>
      %18 = vector.shape_cast %15 : vector<8x1024xf32> to vector<1x8x1024xf32>
      tpu.vector_store %arg4[%c0_11, %c0_12, %c0_13], %18 {strides = array<i32>} : memref<1x8x1024xf32, #tpu.memory_space<vmem>>, vector<1x8x1024xf32>,
    } else {
    }
    %cst = arith.constant 0.000000e+00 : f32
    %3 = vector.broadcast %cst : f32 to vector<8x1024xf32>
    %c0 = arith.constant 0 : index
    %c0_1 = arith.constant 0 : index
    %4 = vector.load %arg3[%c0, %c0_1] : memref<8x1024xf32, #tpu.memory_space<vmem>>, vector<8x1024xf32>
    %c0_2 = arith.constant 0 : index
    %c0_3 = arith.constant 0 : index
    %5 = vector.load %arg2[%c0_2, %c0_3] : memref<8x1024xf32, #tpu.memory_space<vmem>>, vector<8x1024xf32>
    %6 = arith.subf %4, %5 : vector<8x1024xf32>
    %7 = arith.mulf %6, %6 : vector<8x1024xf32>
    %8 = arith.addf %3, %7 : vector<8x1024xf32>
    %c0_4 = arith.constant 0 : index
    %c0_5 = arith.constant 0 : index
    %c0_6 = arith.constant 0 : index
    %9 = vector.load %arg4[%c0_4, %c0_5, %c0_6] : memref<1x8x1024xf32, #tpu.memory_space<vmem>>, vector<1x8x1024xf32>
    %10 = vector.shape_cast %9 : vector<1x8x1024xf32> to vector<8x1024xf32>
    %11 = arith.addf %10, %8 : vector<8x1024xf32>
    %c0_7 = arith.constant 0 : index
    %c0_8 = arith.constant 0 : index
    %c0_9 = arith.constant 0 : index
    %12 = vector.load %arg4[%c0_7, %c0_8, %c0_9] : memref<1x8x1024xf32, #tpu.memory_space<vmem>>, vector<1x8x1024xf32>
    %13 = vector.shape_cast %12 : vector<1x8x1024xf32> to vector<8x1024xf32>
    %14 = vector.shape_cast %11 : vector<8x1024xf32> to vector<1x8x1024xf32>
    tpu.vector_store %arg4[%c0_7, %c0_8, %c0_9], %14 {strides = array<i32>} : memref<1x8x1024xf32, #tpu.memory_space<vmem>>, vector<1x8x1024xf32>,
    return
  }
  func.func @transform_0(%arg0: i32, %arg1: i32) -> (i32, i32) {
    %c1_i32 = arith.constant 1 : i32
    %0 = arith.muli %arg0, %c1_i32 : i32
    %1 = arith.addi %0, %arg1 : i32
    %c0_i32 = arith.constant 0 : i32
    %c0_i32_0 = arith.constant 0 : i32
    return %1, %c0_i32 : i32, i32
  }
  func.func @transform_1(%arg0: i32, %arg1: i32) -> (i32, i32) {
    %c1_i32 = arith.constant 1 : i32
    %0 = arith.muli %arg0, %c1_i32 : i32
    %1 = arith.addi %0, %arg1 : i32
    %c0_i32 = arith.constant 0 : i32
    %c0_i32_0 = arith.constant 0 : i32
    return %1, %c0_i32 : i32, i32
  }
  func.func @transform_2(%arg0: i32, %arg1: i32) -> (i32, i32, i32) {
    %c0_i32 = arith.constant 0 : i32
    %c0_i32_0 = arith.constant 0 : i32
    %c0_i32_1 = arith.constant 0 : i32
    return %arg0, %c0_i32, %c0_i32_0 : i32, i32, i32
  }
}

</mosaic_0001>

<llo_original>
// kernel: tpu_custom_call.1
$region0: #{tpu_custom_call.1}
  #allocation0 [shape = 'u32[]', space=smem, size = 0x4, offset = 0x4, fixed_abs, tag = 'smem constant byte address 0x4 - core index']
  #allocation1 [shape = 'u32[144,128]{1,0:T(1,128)}', space=vmem, size = 0x12000, scoped, tag = 'internal scratch']
  %s0 = inlined_call_operand.hbm [shape: f32[8,1024], index: 0, kind: input, shape index: {}]
  %s1 = inlined_call_operand.hbm [shape: f32[8,1024], index: 1, kind: input, shape index: {}]
  %s2 = inlined_call_operand.hbm [shape: f32[1,8,1024], index: 2, kind: output, shape index: {}]
  %s3 = sld [smem:[#allocation0]]
  $region30: #{tpu_custom_call.1} parent=0
    _
  %s5 = ssub.s32 1, %s3
  %s6 = scalar_select 0, %s5, %s3
  $region1: #{tpu_custom_call.1} parent=0
    #allocation2 [shape = 'u8[32768]{0}', space=vmem, size = 0x8000, scoped, tag = 'input window, operand 0, single buffered']
    #allocation3 [shape = 's32[1]{0}', space=sflag, size = 0x4, scoped, tag = 'scoped memory for tpu_custom_call.1']
    #allocation4 [shape = 's32[1]{0}', space=sflag, size = 0x4, scoped, tag = 'scoped memory for tpu_custom_call.1']
    #allocation5 [shape = 'u8[32768]{0}', space=vmem, size = 0x8000, scoped, tag = 'input window, operand 1, single buffered']
    #allocation6 [shape = 's32[1]{0}', space=sflag, size = 0x4, scoped, tag = 'scoped memory for tpu_custom_call.1']
    #allocation7 [shape = 'u8[32768]{0}', space=vmem, size = 0x8000, scoped, tag = 'output window, operand 0, single buffered']
    %7 = vsyncpa [#allocation3], 0
    %8 = vsyncpa [#allocation6], 0
    %9 = vsyncpa [#allocation4], 0
    // Predicated region
    $region2: #{tpu_custom_call.1} parent=1 // pred_check
      _
    $region3: #{tpu_custom_call.1} parent=1 // pred_check_branch
      %11 = sbr.rel (0) target = $region5
    $region4: #{tpu_custom_call.1} parent=1 // pred_region
      %s12 = sadd.s32 0, 0
      %s14 = ssub.s32 1024, 1024
      %15 = vsyncadd [#allocation3], %s14
      %s16 = smul.addr %s12, 8
      %s17 = smul.addr %s16, 128
      %s18 = scalar_lea.hbm %s0, %s17
      %s20 = sshll.u32 [#allocation2], 4
      %s21 = int_to_ptr.vmem [resolvable:$true] %s20
      %23 = dma.hbm_to_vmem [thread:$0]  %s18, 1024, %s21, [#allocation3]
    $region5: #{tpu_custom_call.1} parent=1 // pred_fallthru
      _
    // Predicated region
    $region6: #{tpu_custom_call.1} parent=1 // pred_check
      _
    $region7: #{tpu_custom_call.1} parent=1 // pred_check_branch
      %25 = sbr.rel (0) target = $region9
    $region8: #{tpu_custom_call.1} parent=1 // pred_region
      %s26 = sadd.s32 0, 0
      %s28 = ssub.s32 1024, 1024
      %29 = vsyncadd [#allocation6], %s28
      %s30 = smul.addr %s26, 8
      %s31 = smul.addr %s30, 128
      %s32 = scalar_lea.hbm %s1, %s31
      %s34 = sshll.u32 [#allocation5], 4
      %s35 = int_to_ptr.vmem [resolvable:$true] %s34
      %37 = dma.hbm_to_vmem [thread:$0]  %s32, 1024, %s35, [#allocation6]
    $region9: #{tpu_custom_call.1} parent=1 // pred_fallthru
      _
    // Predicated region
    $region10: #{tpu_custom_call.1} parent=1 // pred_check
      _
    $region11: #{tpu_custom_call.1} parent=1 // pred_check_branch
      %39 = sbr.rel (0) target = $region13
    $region12: #{tpu_custom_call.1} parent=1 // pred_region
      %40 = dma.done [#allocation3], 1024
    $region13: #{tpu_custom_call.1} parent=1 // pred_fallthru
      _
    // Predicated region
    $region14: #{tpu_custom_call.1} parent=1 // pred_check
      _
    $region15: #{tpu_custom_call.1} parent=1 // pred_check_branch
      %42 = sbr.rel (0) target = $region17
    $region16: #{tpu_custom_call.1} parent=1 // pred_region
      %43 = dma.done [#allocation6], 1024
    $region17: #{tpu_custom_call.1} parent=1 // pred_fallthru
      _
    %s44 = sadd.s32 0, 0
    %s45 = sadd.s32 0, 0
    %p46 = scmp.eq.s32.totalorder 0, 0
    // Predicated region
    $region18: #{tpu_custom_call.1} parent=1 // pred_check
      %p47 = pneg %p46
    $region19: #{tpu_custom_call.1} parent=1 // pred_check_branch
      %49 = sbr.rel (%p47) target = $region21
    $region20: #{tpu_custom_call.1} parent=1 // pred_region
      %50 = vst [vmem:[#allocation7] sm:$0xff] 0.0
      %51 = vst [vmem:[#allocation7 + $0x8] sm:$0xff] 0.0
      %52 = vst [vmem:[#allocation7 + $0x10] sm:$0xff] 0.0
      %53 = vst [vmem:[#allocation7 + $0x18] sm:$0xff] 0.0
      %54 = vst [vmem:[#allocation7 + $0x20] sm:$0xff] 0.0
      %55 = vst [vmem:[#allocation7 + $0x28] sm:$0xff] 0.0
      %56 = vst [vmem:[#allocation7 + $0x30] sm:$0xff] 0.0
      %57 = vst [vmem:[#allocation7 + $0x38] sm:$0xff] 0.0
    $region21: #{tpu_custom_call.1} parent=1 // pred_fallthru
      _
    %v58 = vld [vmem:[#allocation5] sm:$0xff]
    %v59 = vld [vmem:[#allocation5 + $0x8] sm:$0xff]
    %v60 = vld [vmem:[#allocation5 + $0x10] sm:$0xff]
    %v61 = vld [vmem:[#allocation5 + $0x18] sm:$0xff]
    %v62 = vld [vmem:[#allocation5 + $0x20] sm:$0xff]
    %v63 = vld [vmem:[#allocation5 + $0x28] sm:$0xff]
    %v64 = vld [vmem:[#allocation5 + $0x30] sm:$0xff]
    %v65 = vld [vmem:[#allocation5 + $0x38] sm:$0xff]
    %v66 = vld [vmem:[#allocation2] sm:$0xff]
    %v67 = vld [vmem:[#allocation2 + $0x8] sm:$0xff]
    %v68 = vld [vmem:[#allocation2 + $0x10] sm:$0xff]
    %v69 = vld [vmem:[#allocation2 + $0x18] sm:$0xff]
    %v70 = vld [vmem:[#allocation2 + $0x20] sm:$0xff]
    %v71 = vld [vmem:[#allocation2 + $0x28] sm:$0xff]
    %v72 = vld [vmem:[#allocation2 + $0x30] sm:$0xff]
    %v73 = vld [vmem:[#allocation2 + $0x38] sm:$0xff]
    %v74 = vsub.f32 %v58, %v66
    %v75 = vsub.f32 %v59, %v67
    %v76 = vsub.f32 %v60, %v68
    %v77 = vsub.f32 %v61, %v69
    %v78 = vsub.f32 %v62, %v70
    %v79 = vsub.f32 %v63, %v71
    %v80 = vsub.f32 %v64, %v72
    %v81 = vsub.f32 %v65, %v73
    %v82 = vmul.f32 %v74, %v74
    %v83 = vmul.f32 %v75, %v75
    %v84 = vmul.f32 %v76, %v76
    %v85 = vmul.f32 %v77, %v77
    %v86 = vmul.f32 %v78, %v78
    %v87 = vmul.f32 %v79, %v79
    %v88 = vmul.f32 %v80, %v80
    %v89 = vmul.f32 %v81, %v81
    %v90 = vadd.f32 %v82, 0.0
    %v91 = vadd.f32 %v83, 0.0
    %v92 = vadd.f32 %v84, 0.0
    %v93 = vadd.f32 %v85, 0.0
    %v94 = vadd.f32 %v86, 0.0
    %v95 = vadd.f32 %v87, 0.0
    %v96 = vadd.f32 %v88, 0.0
    %v97 = vadd.f32 %v89, 0.0
    %v98 = vld [vmem:[#allocation7] sm:$0xff]
    %v99 = vld [vmem:[#allocation7 + $0x8] sm:$0xff]
    %v100 = vld [vmem:[#allocation7 + $0x10] sm:$0xff]
    %v101 = vld [vmem:[#allocation7 + $0x18] sm:$0xff]
    %v102 = vld [vmem:[#allocation7 + $0x20] sm:$0xff]
    %v103 = vld [vmem:[#allocation7 + $0x28] sm:$0xff]
    %v104 = vld [vmem:[#allocation7 + $0x30] sm:$0xff]
    %v105 = vld [vmem:[#allocation7 + $0x38] sm:$0xff]
    %v106 = vadd.f32 %v98, %v90
    %v107 = vadd.f32 %v99, %v91
    %v108 = vadd.f32 %v100, %v92
    %v109 = vadd.f32 %v101, %v93
    %v110 = vadd.f32 %v102, %v94
    %v111 = vadd.f32 %v103, %v95
    %v112 = vadd.f32 %v104, %v96
    %v113 = vadd.f32 %v105, %v97
    %114 = vst [vmem:[#allocation7] sm:$0xff] %v106
    %115 = vst [vmem:[#allocation7 + $0x8] sm:$0xff] %v107
    %116 = vst [vmem:[#allocation7 + $0x10] sm:$0xff] %v108
    %117 = vst [vmem:[#allocation7 + $0x18] sm:$0xff] %v109
    %118 = vst [vmem:[#allocation7 + $0x20] sm:$0xff] %v110
    %119 = vst [vmem:[#allocation7 + $0x28] sm:$0xff] %v111
    %120 = vst [vmem:[#allocation7 + $0x30] sm:$0xff] %v112
    %121 = vst [vmem:[#allocation7 + $0x38] sm:$0xff] %v113
    // Predicated region
    $region22: #{tpu_custom_call.1} parent=1 // pred_check
      _
    $region23: #{tpu_custom_call.1} parent=1 // pred_check_branch
      %123 = sbr.rel (0) target = $region25
    $region24: #{tpu_custom_call.1} parent=1 // pred_region
      %s125 = ssub.s32 1024, 1024
      %126 = vsyncadd [#allocation4], %s125
      %s128 = sshll.u32 [#allocation7], 4
      %s129 = int_to_ptr.vmem [resolvable:$true] %s128
      %131 = dma.vmem_to_hbm [thread:$0]  %s129, 1024, %s2, [#allocation4]
    $region25: #{tpu_custom_call.1} parent=1 // pred_fallthru
      _
    // Predicated region
    $region26: #{tpu_custom_call.1} parent=1 // pred_check
      _
    $region27: #{tpu_custom_call.1} parent=1 // pred_check_branch
      %133 = sbr.rel (0) target = $region29
    $region28: #{tpu_custom_call.1} parent=1 // pred_region
      %134 = dma.done [#allocation4], 1024
    $region29: #{tpu_custom_call.1} parent=1 // pred_fallthru
      _
    %135 = vsyncpa [#allocation3], 1
    %136 = vsyncpa [#allocation6], 1
    %137 = vsyncpa [#allocation4], 1

</llo_original>
